<compile_context>
chip_gen: v7x
topology: tpu7x:2x2x1
jax: 0.10.0
libtpu: 0.0.40
codegen_flags: <defaults>
</compile_context>

<pallas_src>
import functools

import jax
import jax.numpy as jnp
from jax.experimental import pallas as pl
from jax.experimental.pallas import tpu as pltpu


def _round_up(v, m):
    return ((v + m - 1) // m) * m


def fc_kernel(inv_t_ref, x_ref, w_ref, b_ref, out_ref, *,
              num_layers, state_dim, act_dim, activation):
    # inv_t_ref: (1,) f32 in SMEM           (runtime 1/T scalar)
    # x_ref:     (block_b, state_dim) bf16
    # w_ref:     (L, P, P) bf16  (zero-padded weight slab, W^T per layer)
    # b_ref:     (L, 1, P) f32   (zero-padded bias slab)
    # out_ref:   (block_b, act_dim) f32
    h = x_ref[...]
    z = None
    for j in range(num_layers):                 # static unroll (hidden layers + head)
        w = w_ref[j]                            # (P, P) bf16
        if j == 0:
            w = w[:state_dim, :]                # real contraction width of layer 0
        z = jnp.dot(h, w, preferred_element_type=jnp.float32) + b_ref[j]
        if j < num_layers - 1:
            a = jnp.tanh(z) if activation == 'tanh' else jnp.maximum(z, 0.0)
            h = a.astype(jnp.bfloat16)          # padded lanes stay exactly 0

    # softmax(scores / T) over the real act_dim lanes; padded lanes masked off.
    logits = z * inv_t_ref[0]
    lane = jax.lax.broadcasted_iota(jnp.int32, logits.shape, 1)
    logits = jnp.where(lane < act_dim, logits, -1e30)
    m = jnp.max(logits, axis=1, keepdims=True)
    e = jnp.exp(logits - m)                     # padded lanes underflow to exactly 0
    denom = jnp.sum(e, axis=1, keepdims=True)
    # Exact normalization (rows sum to 1 within f32 rounding); true-width store.
    out_ref[...] = e[:, :act_dim] / denom


def prepare_params(params, activation='tanh'):
    """One-time layout prep (call OUTSIDE the hot loop).

    `params` is a flat tuple of PyTorch-shaped (weight (out,in), bias (out,))
    pairs: hidden layers first, head layer last.  Returns padded bf16/f32 slabs
    plus static metadata for fc_forward.
    """
    assert len(params) % 2 == 0 and len(params) >= 2
    num_layers = len(params) // 2
    in_dims = [params[2 * j].shape[1] for j in range(num_layers)]
    out_dims = [params[2 * j].shape[0] for j in range(num_layers)]
    state_dim, act_dim = in_dims[0], out_dims[-1]

    # Common padded width: every layer's W^T lives in a (P, P) slot of one slab.
    P = _round_up(max(in_dims + out_dims), 128)

    w_slab = jnp.zeros((num_layers, P, P), jnp.bfloat16)
    b_slab = jnp.zeros((num_layers, 1, P), jnp.float32)
    for j in range(num_layers):
        w_t = jnp.transpose(params[2 * j]).astype(jnp.bfloat16)      # (in, out)
        w_slab = w_slab.at[j, :in_dims[j], :out_dims[j]].set(w_t)
        b_slab = b_slab.at[j, 0, :out_dims[j]].set(params[2 * j + 1].astype(jnp.float32))

    return dict(w=w_slab, b=b_slab, state_dim=state_dim, act_dim=act_dim,
                num_layers=num_layers, activation=activation)


def fc_forward(x, prepared, T=1.0):
    """Pallas implementation of FC.forward (returns softmax probabilities)."""
    if T == 0:
        T = 1.0
    w, b = prepared['w'], prepared['b']
    state_dim, act_dim = prepared['state_dim'], prepared['act_dim']
    num_layers = prepared['num_layers']
    L, P, _ = w.shape

    B = x.shape[0]
    x = x.astype(jnp.bfloat16)          # halves x DMA; accumulation stays f32

    # Batch tiling: single block for small B; 256-row blocks (>=2 grid steps,
    # 'parallel' axis -> both v7x TensorCores) for large B.  Never tiny tiles.
    if B <= 256:
        block_b, b_pad = B, B
    else:
        block_b = 256
        b_pad = pl.cdiv(B, block_b) * block_b
        if b_pad != B:
            x = jnp.pad(x, ((0, b_pad - B), (0, 0)))
    grid = (b_pad // block_b,)

    # Runtime scalar: temperature changes never trigger a recompile.
    inv_t = jnp.full((1,), 1.0 / float(T), jnp.float32)

    kernel = functools.partial(fc_kernel, num_layers=num_layers,
                               state_dim=state_dim, act_dim=act_dim,
                               activation=prepared['activation'])
    out = pl.pallas_call(
        kernel,
        out_shape=jax.ShapeDtypeStruct((b_pad, act_dim), jnp.float32),
        grid=grid,
        in_specs=[
            pl.BlockSpec(memory_space=pltpu.MemorySpace.SMEM),         # 1/T
            pl.BlockSpec((block_b, state_dim), lambda i: (i, 0)),      # x
            pl.BlockSpec((L, P, P), lambda i: (0, 0, 0)),              # W slab (fetched once)
            pl.BlockSpec((L, 1, P), lambda i: (0, 0, 0)),              # b slab (fetched once)
        ],
        out_specs=pl.BlockSpec((block_b, act_dim), lambda i: (i, 0)),
        compiler_params=pltpu.CompilerParams(
            dimension_semantics=("parallel",)),
    )(inv_t, x, w, b)
    return out[:B] if b_pad != B else out


# ---------------- pure-JAX reference (for correctness check) ----------------
def fc_forward_ref(x, params, T=1.0, activation='tanh'):
    if T == 0:
        T = 1.0
    act = jnp.tanh if activation == 'tanh' else (lambda v: jnp.maximum(v, 0.0))
    num_layers = len(params) // 2
    h = x
    for j in range(num_layers):
        w, b = params[2 * j], params[2 * j + 1]
        h = h @ w.T + b
        if j < num_layers - 1:
            h = act(h)
    return jax.nn.softmax(h / T, axis=1)


if __name__ == "__main__":
    # Module defaults: state_dim=4, act_dim=2, mid_sizes=(32, 32), tanh.
    B, state_dim, act_dim = 2, 4, 2
    h1, h2 = 32, 32

    key = jax.random.PRNGKey(0)
    kx, k1, k2, k3, k4, k5, k6, kb = jax.random.split(key, 8)
    x = jax.random.normal(kx, (B, state_dim), jnp.float32)

    # Deterministic synthetic parameters (PyTorch layouts: weight (out,in)).
    params = (
        jax.random.normal(k1, (h1, state_dim), jnp.float32) * 0.3,   # layers[0].weight
        jax.random.normal(k2, (h1,), jnp.float32) * 0.1,             # layers[0].bias
        jax.random.normal(k3, (h2, h1), jnp.float32) * 0.2,          # layers[1].weight
        jax.random.normal(k4, (h2,), jnp.float32) * 0.1,             # layers[1].bias
        jax.random.normal(k5, (act_dim, h2), jnp.float32) * 0.2,     # head.weight
        jax.random.normal(k6, (act_dim,), jnp.float32) * 0.1,        # head.bias
    )

    # One-time parameter layout prep (outside the hot loop).
    prepared = prepare_params(params, activation='tanh')

    probs = jax.block_until_ready(fc_forward(x, prepared, T=1.0))
    ref = fc_forward_ref(x, params, T=1.0)
    assert probs.shape == (B, act_dim)
    assert jnp.allclose(jnp.sum(probs, axis=1), 1.0, atol=1e-3)
    assert jnp.allclose(probs, ref, atol=2e-2, rtol=2e-2)

    # Different temperature reuses the same compiled kernel (runtime 1/T scalar).
    probs_t = jax.block_until_ready(fc_forward(x, prepared, T=2.0))
    ref_t = fc_forward_ref(x, params, T=2.0)
    assert jnp.allclose(probs_t, ref_t, atol=2e-2, rtol=2e-2)

    # Larger batch exercises the 256-row tiled path (grid >= 2 -> both v7x TCs).
    Bb = 384
    xb = jax.random.normal(kb, (Bb, state_dim), jnp.float32)
    probs_b = jax.block_until_ready(fc_forward(xb, prepared, T=1.0))
    ref_b = fc_forward_ref(xb, params, T=1.0)
    assert probs_b.shape == (Bb, act_dim)
    assert jnp.allclose(jnp.sum(probs_b, axis=1), 1.0, atol=1e-3)
    assert jnp.allclose(probs_b, ref_b, atol=2e-2, rtol=2e-2)

    print("KERNEL_OK")
</pallas_src>

<mosaic_0001>
module attributes {stable_mosaic.version = 11 : i64} {
  func.func @fc_kernel(%arg0: i32, %arg1: memref<1xf32, #tpu.memory_space<smem>>, %arg2: memref<2x4xbf16, #tpu.memory_space<vmem>>, %arg3: memref<3x128x128xbf16, #tpu.memory_space<vmem>>, %arg4: memref<3x1x128xf32, #tpu.memory_space<vmem>>, %arg5: memref<2x2xf32, #tpu.memory_space<vmem>>) attributes {dimension_semantics = [#tpu.dimension_semantics<parallel>], iteration_bounds = array<i64: 1>, scalar_prefetch = 0 : i64, scratch_operands = 0 : i64, tpu.core_type = #tpu.core_type<tc>, window_params = [{transform_indices = @transform_0, window_bounds = array<i64: 1>}, {transform_indices = @transform_1, window_bounds = array<i64: 2, 4>}, {pipeline_mode = #tpu.pipeline_mode<synchronous>, transform_indices = @transform_2, window_bounds = array<i64: 3, 128, 128>}, {pipeline_mode = #tpu.pipeline_mode<synchronous>, transform_indices = @transform_3, window_bounds = array<i64: 3, 1, 128>}, {transform_indices = @transform_4, window_bounds = array<i64: 2, 2>}]} {
    %c0 = arith.constant 0 : index
    %c0_0 = arith.constant 0 : index
    %0 = vector.load %arg2[%c0, %c0_0] : memref<2x4xbf16, #tpu.memory_space<vmem>>, vector<2x4xbf16>
    %c0_1 = arith.constant 0 : index
    %c0_2 = arith.constant 0 : index
    %c0_3 = arith.constant 0 : index
    %1 = vector.load %arg3[%c0_1, %c0_2, %c0_3] : memref<3x128x128xbf16, #tpu.memory_space<vmem>>, vector<1x128x128xbf16>
    %2 = vector.shape_cast %1 : vector<1x128x128xbf16> to vector<128x128xbf16>
    %3 = vector.extract_strided_slice %2 {offsets = [0, 0], sizes = [4, 128], strides = [1, 1]} : vector<128x128xbf16> to vector<4x128xbf16>
    %cst = arith.constant dense<0.000000e+00> : vector<2x128xf32>
    %4 = tpu.matmul %0, %3, %cst {dimension_numbers = #tpu.dot_dimension_numbers<[1], [0], [0], [1], [0, 0, 1, 1], [], []>} : vector<2x4xbf16>, vector<4x128xbf16>, vector<2x128xf32> -> vector<2x128xf32>
    %c0_4 = arith.constant 0 : index
    %c0_5 = arith.constant 0 : index
    %c0_6 = arith.constant 0 : index
    %5 = vector.load %arg4[%c0_4, %c0_5, %c0_6] : memref<3x1x128xf32, #tpu.memory_space<vmem>>, vector<1x1x128xf32>
    %6 = vector.shape_cast %5 : vector<1x1x128xf32> to vector<1x128xf32>
    %7 = vector.broadcast %6 : vector<1x128xf32> to vector<2x128xf32>
    %8 = arith.addf %4, %7 : vector<2x128xf32>
    %9 = math.tanh %8 : vector<2x128xf32>
    %10 = arith.truncf %9 : vector<2x128xf32> to vector<2x128xbf16>
    %c1 = arith.constant 1 : index
    %c0_7 = arith.constant 0 : index
    %c0_8 = arith.constant 0 : index
    %11 = vector.load %arg3[%c1, %c0_7, %c0_8] : memref<3x128x128xbf16, #tpu.memory_space<vmem>>, vector<1x128x128xbf16>
    %12 = vector.shape_cast %11 : vector<1x128x128xbf16> to vector<128x128xbf16>
    %cst_9 = arith.constant dense<0.000000e+00> : vector<2x128xf32>
    %13 = tpu.matmul %10, %12, %cst_9 {dimension_numbers = #tpu.dot_dimension_numbers<[1], [0], [0], [1], [0, 0, 1, 1], [], []>} : vector<2x128xbf16>, vector<128x128xbf16>, vector<2x128xf32> -> vector<2x128xf32>
    %c1_10 = arith.constant 1 : index
    %c0_11 = arith.constant 0 : index
    %c0_12 = arith.constant 0 : index
    %14 = vector.load %arg4[%c1_10, %c0_11, %c0_12] : memref<3x1x128xf32, #tpu.memory_space<vmem>>, vector<1x1x128xf32>
    %15 = vector.shape_cast %14 : vector<1x1x128xf32> to vector<1x128xf32>
    %16 = vector.broadcast %15 : vector<1x128xf32> to vector<2x128xf32>
    %17 = arith.addf %13, %16 : vector<2x128xf32>
    %18 = math.tanh %17 : vector<2x128xf32>
    %19 = arith.truncf %18 : vector<2x128xf32> to vector<2x128xbf16>
    %c2 = arith.constant 2 : index
    %c0_13 = arith.constant 0 : index
    %c0_14 = arith.constant 0 : index
    %20 = vector.load %arg3[%c2, %c0_13, %c0_14] : memref<3x128x128xbf16, #tpu.memory_space<vmem>>, vector<1x128x128xbf16>
    %21 = vector.shape_cast %20 : vector<1x128x128xbf16> to vector<128x128xbf16>
    %cst_15 = arith.constant dense<0.000000e+00> : vector<2x128xf32>
    %22 = tpu.matmul %19, %21, %cst_15 {dimension_numbers = #tpu.dot_dimension_numbers<[1], [0], [0], [1], [0, 0, 1, 1], [], []>} : vector<2x128xbf16>, vector<128x128xbf16>, vector<2x128xf32> -> vector<2x128xf32>
    %c2_16 = arith.constant 2 : index
    %c0_17 = arith.constant 0 : index
    %c0_18 = arith.constant 0 : index
    %23 = vector.load %arg4[%c2_16, %c0_17, %c0_18] : memref<3x1x128xf32, #tpu.memory_space<vmem>>, vector<1x1x128xf32>
    %24 = vector.shape_cast %23 : vector<1x1x128xf32> to vector<1x128xf32>
    %25 = vector.broadcast %24 : vector<1x128xf32> to vector<2x128xf32>
    %26 = arith.addf %22, %25 : vector<2x128xf32>
    %c0_19 = arith.constant 0 : index
    %27 = memref.load %arg1[%c0_19] : memref<1xf32, #tpu.memory_space<smem>>
    %28 = vector.broadcast %27 : f32 to vector<2x128xf32>
    %29 = arith.mulf %26, %28 : vector<2x128xf32>
    %30 = tpu.iota {dimensions = array<i32: 1>} : vector<2x128xi32>
    %c2_i32 = arith.constant 2 : i32
    %31 = vector.broadcast %c2_i32 : i32 to vector<2x128xi32>
    %32 = arith.cmpi slt, %30, %31 : vector<2x128xi32>
    %cst_20 = arith.constant -1.000000e+30 : f32
    %33 = vector.broadcast %cst_20 : f32 to vector<2x128xf32>
    %34 = arith.select %32, %29, %33 : vector<2x128xi1>, vector<2x128xf32>
    %cst_21 = arith.constant dense<0xFF800000> : vector<2xf32>
    %35 = vector.multi_reduction <maximumf>, %34, %cst_21 [1] : vector<2x128xf32> to vector<2xf32>
    %36 = vector.shape_cast %35 : vector<2xf32> to vector<2x1xf32>
    %37 = vector.broadcast %36 : vector<2x1xf32> to vector<2x128xf32>
    %38 = arith.subf %34, %37 : vector<2x128xf32>
    %39 = math.exp %38 : vector<2x128xf32>
    %cst_22 = arith.constant dense<0.000000e+00> : vector<2xf32>
    %40 = vector.multi_reduction <add>, %39, %cst_22 [1] : vector<2x128xf32> to vector<2xf32>
    %41 = vector.shape_cast %40 : vector<2xf32> to vector<2x1xf32>
    %42 = vector.extract_strided_slice %39 {offsets = [0, 0], sizes = [2, 2], strides = [1, 1]} : vector<2x128xf32> to vector<2x2xf32>
    %43 = vector.broadcast %41 : vector<2x1xf32> to vector<2x2xf32>
    %44 = arith.divf %42, %43 : vector<2x2xf32>
    %c0_23 = arith.constant 0 : index
    %c0_24 = arith.constant 0 : index
    %45 = vector.load %arg5[%c0_23, %c0_24] : memref<2x2xf32, #tpu.memory_space<vmem>>, vector<2x2xf32>
    tpu.vector_store %arg5[%c0_23, %c0_24], %44 {strides = array<i32>} : memref<2x2xf32, #tpu.memory_space<vmem>>, vector<2x2xf32>,
    return
  }
  func.func @transform_0(%arg0: i32) -> i32 {
    %c0_i32 = arith.constant 0 : i32
    %c0_i32_0 = arith.constant 0 : i32
    return %c0_i32 : i32
  }
  func.func @transform_1(%arg0: i32) -> (i32, i32) {
    %c0_i32 = arith.constant 0 : i32
    %c0_i32_0 = arith.constant 0 : i32
    return %arg0, %c0_i32 : i32, i32
  }
  func.func @transform_2(%arg0: i32) -> (i32, i32, i32) {
    %c0_i32 = arith.constant 0 : i32
    %c0_i32_0 = arith.constant 0 : i32
    %c0_i32_1 = arith.constant 0 : i32
    %c0_i32_2 = arith.constant 0 : i32
    return %c0_i32, %c0_i32_0, %c0_i32_1 : i32, i32, i32
  }
  func.func @transform_3(%arg0: i32) -> (i32, i32, i32) {
    %c0_i32 = arith.constant 0 : i32
    %c0_i32_0 = arith.constant 0 : i32
    %c0_i32_1 = arith.constant 0 : i32
    %c0_i32_2 = arith.constant 0 : i32
    return %c0_i32, %c0_i32_0, %c0_i32_1 : i32, i32, i32
  }
  func.func @transform_4(%arg0: i32) -> (i32, i32) {
    %c0_i32 = arith.constant 0 : i32
    %c0_i32_0 = arith.constant 0 : i32
    return %arg0, %c0_i32 : i32, i32
  }
}

</mosaic_0001>

<llo_original>
// kernel: tpu_custom_call.1
$region0: #{tpu_custom_call.1}
  #allocation0 [shape = 'u32[]', space=smem, size = 0x4, offset = 0x4, fixed_abs, tag = 'smem constant byte address 0x4 - core index']
  #allocation1 [shape = 'u32[144,128]{1,0:T(1,128)}', space=vmem, size = 0x12000, scoped, tag = 'internal scratch']
  #allocation2 [shape = 'f32[1]{0:T(128)S(6)}', space=smem, size = 0x200, scoped, tag = 'scoped memory for tpu_custom_call.1']
  %s0 = inlined_call_operand.<no memory space> [shape: f32[1], index: 0, kind: input, shape index: {}]
  %s1 = inlined_call_operand.vmem [shape: bf16[2,4], index: 1, kind: input, shape index: {}]
  %s2 = inlined_call_operand.hbm [shape: bf16[3,128,128], index: 2, kind: input, shape index: {}]
  %s3 = inlined_call_operand.vmem [shape: f32[3,1,128], index: 3, kind: input, shape index: {}]
  %s4 = inlined_call_operand.hbm [shape: f32[2,2], index: 4, kind: output, shape index: {}]
  %s5 = sld [smem:[#allocation0]]
  $region30: #{tpu_custom_call.1} parent=0
    _
  %s7 = ssub.s32 1, %s5
  %s8 = scalar_select 0, %s7, %s5
  %9 = sst [smem:[#allocation2]] %s0
  $region1: #{tpu_custom_call.1} parent=0
    #allocation3 [shape = 'u8[98304]{0}', space=vmem, size = 0x18000, scoped, tag = 'input window, operand 2, single buffered']
    #allocation4 [shape = 's32[1]{0}', space=sflag, size = 0x4, scoped, tag = 'scoped memory for tpu_custom_call.1']
    #allocation5 [shape = 's32[1]{0}', space=sflag, size = 0x4, scoped, tag = 'scoped memory for tpu_custom_call.1']
    #allocation6 [shape = 'u8[1024]{0}', space=vmem, size = 0x400, scoped, tag = 'output window, operand 0, single buffered']
    %10 = vsyncpa [#allocation4], 0
    %11 = vsyncpa [#allocation5], 0
    // Predicated region
    $region2: #{tpu_custom_call.1} parent=1 // pred_check
      _
    $region3: #{tpu_custom_call.1} parent=1 // pred_check_branch
      %13 = sbr.rel (0) target = $region5
    $region4: #{tpu_custom_call.1} parent=1 // pred_region
      _
    $region5: #{tpu_custom_call.1} parent=1 // pred_fallthru
      _
    // Predicated region
    $region6: #{tpu_custom_call.1} parent=1 // pred_check
      _
    $region7: #{tpu_custom_call.1} parent=1 // pred_check_branch
      %15 = sbr.rel (0) target = $region9
    $region8: #{tpu_custom_call.1} parent=1 // pred_region
      _
    $region9: #{tpu_custom_call.1} parent=1 // pred_fallthru
      _
    // Predicated region
    $region10: #{tpu_custom_call.1} parent=1 // pred_check
      _
    $region11: #{tpu_custom_call.1} parent=1 // pred_check_branch
      %17 = sbr.rel (0) target = $region13
    $region12: #{tpu_custom_call.1} parent=1 // pred_region
      %s19 = ssub.s32 3072, 3072
      %20 = vsyncadd [#allocation4], %s19
      %s21 = sshll.u32 [#allocation3], 4
      %s22 = int_to_ptr.vmem [resolvable:$true] %s21
      %27 = dma.hbm_to_vmem [thread:$0]  %s2, 3072, %s22, [#allocation4], 64, 64, 4
    $region13: #{tpu_custom_call.1} parent=1 // pred_fallthru
      _
    // Predicated region
    $region14: #{tpu_custom_call.1} parent=1 // pred_check
      _
    $region15: #{tpu_custom_call.1} parent=1 // pred_check_branch
      %29 = sbr.rel (0) target = $region17
    $region16: #{tpu_custom_call.1} parent=1 // pred_region
      _
    $region17: #{tpu_custom_call.1} parent=1 // pred_fallthru
      _
    // Predicated region
    $region18: #{tpu_custom_call.1} parent=1 // pred_check
      _
    $region19: #{tpu_custom_call.1} parent=1 // pred_check_branch
      %31 = sbr.rel (0) target = $region21
    $region20: #{tpu_custom_call.1} parent=1 // pred_region
      %32 = dma.done [#allocation4], 3072
    $region21: #{tpu_custom_call.1} parent=1 // pred_fallthru
      _
    %v34 = vld [vmem:[%s1] sm:$0x1]
    %v35 = vld [vmem:[#allocation3] sm:$0xf]
    %v36 = vld [vmem:[%s3] sm:$0x1]
    %v38 = vlaneseq
    %v39 = vshrl.u32 %v38, 7
    %v40 = vsub.s32 0, %v39
    %v41 = vrot.slane %v36, %v40
    %vm43 = vcmask 31744
    %v45 = vsel %vm43, %v34, 0
    %vm47 = vcmask 1041408
    %v49 = vsel %vm47, %v35, 0
    %51 = vmatprep.subr.bf16.mxu0 0
    %52 = vmatpush1.bf16.msra.mxu0 %v49
    %53 = vmatprep.subr.bf16.mxu0 0
    %54 = vmatpush1.bf16.msra.mxu0 0
    %55 = vmatprep.subr.bf16.mxu0 0
    %56 = vmatpush1.bf16.msra.mxu0 0
    %57 = vmatprep.subr.bf16.mxu0 0
    %58 = vmatpush1.bf16.msra.mxu0 0
    %59 = vmatprep.subr.bf16.mxu0 0
    %60 = vmatpush1.bf16.msra.mxu0 0
    %61 = vmatprep.subr.bf16.mxu0 0
    %62 = vmatpush1.bf16.msra.mxu0 0
    %63 = vmatprep.subr.bf16.mxu0 0
    %64 = vmatpush1.bf16.msra.mxu0 0
    %65 = vmatprep.subr.bf16.mxu0 0
    %66 = vmatpush1.bf16.msra.mxu0 0
    %67 = vmatprep.subr.bf16.mxu0 0
    %68 = vmatpush1.bf16.msra.mxu0 0
    %69 = vmatprep.subr.bf16.mxu0 0
    %70 = vmatpush1.bf16.msra.mxu0 0
    %71 = vmatprep.subr.bf16.mxu0 0
    %72 = vmatpush1.bf16.msra.mxu0 0
    %73 = vmatprep.subr.bf16.mxu0 0
    %74 = vmatpush1.bf16.msra.mxu0 0
    %75 = vmatprep.subr.bf16.mxu0 0
    %76 = vmatpush1.bf16.msra.mxu0 0
    %77 = vmatprep.subr.bf16.mxu0 0
    %78 = vmatpush1.bf16.msra.mxu0 0
    %79 = vmatprep.subr.bf16.mxu0 0
    %80 = vmatpush1.bf16.msra.mxu0 0
    %81 = vmatprep.subr.bf16.mxu0 0
    %82 = vmatpush1.bf16.msra.mxu0 0
    %83 = vmatprep.mubr.bf16.mxu0 0
    %84 = vmatmul.mubr.bf16.gmra.mrb[0].mxu0 %v45
    %v85 = vpop.f32.mrb[0].mxu0
    %v86 = vadd.f32 %v41, %v85
    %v87 = vpop.f32.mrb[0].mxu0
    %v88 = vpop.f32.mrb[0].mxu0
    %v89 = vpop.f32.mrb[0].mxu0
    %90 = vdwg.mxu0
    %v91 = vtanh.pop %v86
    %v92 = vpack.c.bf16 %v91, %v91
    %s93 = scalar_lea.vmem [#allocation3], 64
    %v94 = vld [vmem:[%s93] sm:$0xf]
    %v95 = vld [vmem:[%s93 + $0x4] sm:$0xf]
    %v96 = vld [vmem:[%s93 + $0x8] sm:$0xf]
    %v97 = vld [vmem:[%s93 + $0xc] sm:$0xf]
    %v98 = vld [vmem:[%s93 + $0x10] sm:$0xf]
    %v99 = vld [vmem:[%s93 + $0x14] sm:$0xf]
    %v100 = vld [vmem:[%s93 + $0x18] sm:$0xf]
    %v101 = vld [vmem:[%s93 + $0x1c] sm:$0xf]
    %v102 = vld [vmem:[%s93 + $0x20] sm:$0xf]
    %v103 = vld [vmem:[%s93 + $0x24] sm:$0xf]
    %v104 = vld [vmem:[%s93 + $0x28] sm:$0xf]
    %v105 = vld [vmem:[%s93 + $0x2c] sm:$0xf]
    %v106 = vld [vmem:[%s93 + $0x30] sm:$0xf]
    %v107 = vld [vmem:[%s93 + $0x34] sm:$0xf]
    %v108 = vld [vmem:[%s93 + $0x38] sm:$0xf]
    %v109 = vld [vmem:[%s93 + $0x3c] sm:$0xf]
    %s110 = scalar_lea.vmem %s3, 1
    %v111 = vld [vmem:[%s110] sm:$0x1]
    %v113 = vlaneseq
    %v114 = vshrl.u32 %v113, 7
    %v115 = vsub.s32 0, %v114
    %v116 = vrot.slane %v111, %v115
    %v134 = vunpack.c.l.b16 %v94
    %v135 = vunpack.c.l.b16 %v95
    %v136 = vunpack.c.l.b16 %v96
    %v137 = vunpack.c.l.b16 %v97
    %v138 = vunpack.c.l.b16 %v98
    %v139 = vunpack.c.l.b16 %v99
    %v140 = vunpack.c.l.b16 %v100
    %v141 = vunpack.c.l.b16 %v101
    %v142 = vunpack.c.l.b16 %v102
    %v143 = vunpack.c.l.b16 %v103
    %v144 = vunpack.c.l.b16 %v104
    %v145 = vunpack.c.l.b16 %v105
    %v146 = vunpack.c.l.b16 %v106
    %v147 = vunpack.c.l.b16 %v107
    %v148 = vunpack.c.l.b16 %v108
    %v149 = vunpack.c.l.b16 %v109
    %v150 = vpack.c.b16 %v135, %v134
    %v151 = vpack.c.b16 %v137, %v136
    %v152 = vpack.c.b16 %v139, %v138
    %v153 = vpack.c.b16 %v141, %v140
    %v154 = vpack.c.b16 %v143, %v142
    %v155 = vpack.c.b16 %v145, %v144
    %v156 = vpack.c.b16 %v147, %v146
    %v157 = vpack.c.b16 %v149, %v148
    %166 = vmatprep.subr.bf16.mxu0 0
    %167 = vmatpush1.bf16.msra.mxu0 %v150
    %168 = vmatprep.subr.bf16.mxu0 0
    %169 = vmatpush1.bf16.msra.mxu0 %v151
    %170 = vmatprep.subr.bf16.mxu0 0
    %171 = vmatpush1.bf16.msra.mxu0 %v152
    %172 = vmatprep.subr.bf16.mxu0 0
    %173 = vmatpush1.bf16.msra.mxu0 %v153
    %174 = vmatprep.subr.bf16.mxu0 0
    %175 = vmatpush1.bf16.msra.mxu0 %v154
    %176 = vmatprep.subr.bf16.mxu0 0
    %177 = vmatpush1.bf16.msra.mxu0 %v155
    %178 = vmatprep.subr.bf16.mxu0 0
    %179 = vmatpush1.bf16.msra.mxu0 %v156
    %180 = vmatprep.subr.bf16.mxu0 0
    %181 = vmatpush1.bf16.msra.mxu0 %v157
    %182 = vmatprep.subr.bf16.mxu0 0
    %183 = vmatpush1.bf16.msra.mxu0 0
    %184 = vmatprep.subr.bf16.mxu0 0
    %185 = vmatpush1.bf16.msra.mxu0 0
    %186 = vmatprep.subr.bf16.mxu0 0
    %187 = vmatpush1.bf16.msra.mxu0 0
    %188 = vmatprep.subr.bf16.mxu0 0
    %189 = vmatpush1.bf16.msra.mxu0 0
    %190 = vmatprep.subr.bf16.mxu0 0
    %191 = vmatpush1.bf16.msra.mxu0 0
    %192 = vmatprep.subr.bf16.mxu0 0
    %193 = vmatpush1.bf16.msra.mxu0 0
    %194 = vmatprep.subr.bf16.mxu0 0
    %195 = vmatpush1.bf16.msra.mxu0 0
    %196 = vmatprep.subr.bf16.mxu0 0
    %197 = vmatpush1.bf16.msra.mxu0 0
    %198 = vmatprep.mubr.bf16.mxu0 0
    %199 = vmatmul.mubr.bf16.gmra.mrb[0].mxu0 %v92
    %v200 = vpop.f32.mrb[0].mxu0
    %v201 = vadd.f32 %v116, %v200
    %v202 = vpop.f32.mrb[0].mxu0
    %v203 = vpop.f32.mrb[0].mxu0
    %v204 = vpop.f32.mrb[0].mxu0
    %205 = vdwg.mxu0
    %v206 = vtanh.pop %v201
    %v207 = vpack.c.bf16 %v206, %v206
    %s208 = scalar_lea.vmem [#allocation3], 128
    %v209 = vld [vmem:[%s208] sm:$0xf]
    %v210 = vld [vmem:[%s208 + $0x4] sm:$0xf]
    %v211 = vld [vmem:[%s208 + $0x8] sm:$0xf]
    %v212 = vld [vmem:[%s208 + $0xc] sm:$0xf]
    %v213 = vld [vmem:[%s208 + $0x10] sm:$0xf]
    %v214 = vld [vmem:[%s208 + $0x14] sm:$0xf]
    %v215 = vld [vmem:[%s208 + $0x18] sm:$0xf]
    %v216 = vld [vmem:[%s208 + $0x1c] sm:$0xf]
    %v217 = vld [vmem:[%s208 + $0x20] sm:$0xf]
    %v218 = vld [vmem:[%s208 + $0x24] sm:$0xf]
    %v219 = vld [vmem:[%s208 + $0x28] sm:$0xf]
    %v220 = vld [vmem:[%s208 + $0x2c] sm:$0xf]
    %v221 = vld [vmem:[%s208 + $0x30] sm:$0xf]
    %v222 = vld [vmem:[%s208 + $0x34] sm:$0xf]
    %v223 = vld [vmem:[%s208 + $0x38] sm:$0xf]
    %v224 = vld [vmem:[%s208 + $0x3c] sm:$0xf]
    %s225 = scalar_lea.vmem %s3, 2
    %v226 = vld [vmem:[%s225] sm:$0x1]
    %v228 = vlaneseq
    %v229 = vshrl.u32 %v228, 7
    %v230 = vsub.s32 0, %v229
    %v231 = vrot.slane %v226, %v230
    %v249 = vunpack.c.l.b16 %v209
    %v250 = vunpack.c.l.b16 %v210
    %v251 = vunpack.c.l.b16 %v211
    %v252 = vunpack.c.l.b16 %v212
    %v253 = vunpack.c.l.b16 %v213
    %v254 = vunpack.c.l.b16 %v214
    %v255 = vunpack.c.l.b16 %v215
    %v256 = vunpack.c.l.b16 %v216
    %v257 = vunpack.c.l.b16 %v217
    %v258 = vunpack.c.l.b16 %v218
    %v259 = vunpack.c.l.b16 %v219
    %v260 = vunpack.c.l.b16 %v220
    %v261 = vunpack.c.l.b16 %v221
    %v262 = vunpack.c.l.b16 %v222
    %v263 = vunpack.c.l.b16 %v223
    %v264 = vunpack.c.l.b16 %v224
    %v265 = vpack.c.b16 %v250, %v249
    %v266 = vpack.c.b16 %v252, %v251
    %v267 = vpack.c.b16 %v254, %v253
    %v268 = vpack.c.b16 %v256, %v255
    %v269 = vpack.c.b16 %v258, %v257
    %v270 = vpack.c.b16 %v260, %v259
    %v271 = vpack.c.b16 %v262, %v261
    %v272 = vpack.c.b16 %v264, %v263
    %281 = vmatprep.subr.bf16.mxu0 0
    %282 = vmatpush1.bf16.msra.mxu0 %v265
    %283 = vmatprep.subr.bf16.mxu0 0
    %284 = vmatpush1.bf16.msra.mxu0 %v266
    %285 = vmatprep.subr.bf16.mxu0 0
    %286 = vmatpush1.bf16.msra.mxu0 %v267
    %287 = vmatprep.subr.bf16.mxu0 0
    %288 = vmatpush1.bf16.msra.mxu0 %v268
    %289 = vmatprep.subr.bf16.mxu0 0
    %290 = vmatpush1.bf16.msra.mxu0 %v269
    %291 = vmatprep.subr.bf16.mxu0 0
    %292 = vmatpush1.bf16.msra.mxu0 %v270
    %293 = vmatprep.subr.bf16.mxu0 0
    %294 = vmatpush1.bf16.msra.mxu0 %v271
    %295 = vmatprep.subr.bf16.mxu0 0
    %296 = vmatpush1.bf16.msra.mxu0 %v272
    %297 = vmatprep.subr.bf16.mxu0 0
    %298 = vmatpush1.bf16.msra.mxu0 0
    %299 = vmatprep.subr.bf16.mxu0 0
    %300 = vmatpush1.bf16.msra.mxu0 0
    %301 = vmatprep.subr.bf16.mxu0 0
    %302 = vmatpush1.bf16.msra.mxu0 0
    %303 = vmatprep.subr.bf16.mxu0 0
    %304 = vmatpush1.bf16.msra.mxu0 0
    %305 = vmatprep.subr.bf16.mxu0 0
    %306 = vmatpush1.bf16.msra.mxu0 0
    %307 = vmatprep.subr.bf16.mxu0 0
    %308 = vmatpush1.bf16.msra.mxu0 0
    %309 = vmatprep.subr.bf16.mxu0 0
    %310 = vmatpush1.bf16.msra.mxu0 0
    %311 = vmatprep.subr.bf16.mxu0 0
    %312 = vmatpush1.bf16.msra.mxu0 0
    %313 = vmatprep.mubr.bf16.mxu0 0
    %314 = vmatmul.mubr.bf16.gmra.mrb[0].mxu0 %v207
    %v315 = vpop.f32.mrb[0].mxu0
    %v316 = vadd.f32 %v231, %v315
    %v317 = vpop.f32.mrb[0].mxu0
    %v318 = vpop.f32.mrb[0].mxu0
    %v319 = vpop.f32.mrb[0].mxu0
    %320 = vdwg.mxu0
    %s321 = sld [smem:[#allocation2]]
    %v322 = vstv %s321
    %v323 = vmul.f32 %v316, %v322
    %v324 = vlaneseq
    %v325 = vand.u32 %v324, 127
    %vm326 = vcmp.lt.s32.totalorder %v325, 2
    %v327 = vsel %vm326, %v323, -1e+30
    %v328 = vsel %vm47, %v327, -inf
    %329 = vmax.xlane.f32.xlu0 %v328
    %v330 = vpop.xlane.xlu0 %329
    %v331 = vsub.f32 %v327, %v330
    %v332 = vmul.f32 %v331, 1.442695
    %v333 = vpow.pop %v332
    %v334 = vsel %vm47, %v333, 0.0
    %335 = vadd.xlane.f32.xlu0 %v334
    %v336 = vpop.xlane.xlu0 %335
    %v337 = vrcp.pop %v336
    %v338 = vmul.f32 %v333, %v337
    %vm339 = vcmask 9216
    %340 = vst.msk [vmem:[#allocation6] sm:$0x3] %vm339, %v338
    // Predicated region
    $region22: #{tpu_custom_call.1} parent=1 // pred_check
      _
    $region23: #{tpu_custom_call.1} parent=1 // pred_check_branch
      %342 = sbr.rel (0) target = $region25
    $region24: #{tpu_custom_call.1} parent=1 // pred_region
      %s344 = ssub.s32 32, 32
      %345 = vsyncadd [#allocation5], %s344
      %s347 = sshll.u32 [#allocation6], 4
      %s348 = int_to_ptr.vmem [resolvable:$true] %s347
      %350 = dma.vmem_to_hbm [thread:$0]  %s348, 32, %s4, [#allocation5]
    $region25: #{tpu_custom_call.1} parent=1 // pred_fallthru
      _
    // Predicated region
    $region26: #{tpu_custom_call.1} parent=1 // pred_check
      _
    $region27: #{tpu_custom_call.1} parent=1 // pred_check_branch
      %352 = sbr.rel (0) target = $region29
    $region28: #{tpu_custom_call.1} parent=1 // pred_region
      %353 = dma.done [#allocation5], 32
    $region29: #{tpu_custom_call.1} parent=1 // pred_fallthru
      _
    %354 = vsyncpa [#allocation4], 1
    %355 = vsyncpa [#allocation5], 1

</llo_original>
